<compile_context>
chip_gen: v7x
topology: tpu7x:2x2x1
jax: 0.10.0
libtpu: 0.0.40
codegen_flags: <defaults>
</compile_context>

<pallas_src>
import numpy as np
import jax
import jax.numpy as jnp
from jax.experimental import pallas as pl
from jax.experimental.pallas import tpu as pltpu

LATENT_DIMS = 4          # linear_mean / linear_sig are never called in forward
IN_FEATURES = 48         # forward only touches x[:, 0:48]
CONV_OUT = 72            # 8 channels * 3 * 3 spatial
CONV_COLS = CONV_OUT + 1 # + ones column that produces c on the MXU
HID = 16
OUT_FEATURES = 17        # hstack((h2[., :16], c[., :1]))

ARRANGE = np.array([28, 29, 30, 31, 0, 4, 8, 12, 24, 25, 26, 27, 1, 5, 9, 13,
                    20, 21, 22, 23, 2, 6, 10, 14, 16, 17, 18, 19, 3, 7, 11, 15,
                    47, 43, 39, 35, 35, 34, 33, 32, 46, 42, 38, 34, 39, 38, 37, 36,
                    45, 41, 37, 33, 43, 42, 41, 40, 44, 40, 36, 32, 47, 46, 45, 44])
ARRMASK = np.array([1, 1, 1, 1, 1, 1, 1, 1, 1, 1, 1, 1, 1, 1, 1, 1,
                    1, 1, 1, 1, 1, 1, 1, 1, 1, 1, 1, 1, 1, 1, 1, 1,
                    1, 1, 1, 1, 0, 0, 0, 0, 1, 1, 1, 1, 0, 0, 0, 0,
                    1, 1, 1, 1, 0, 0, 0, 0, 1, 1, 1, 1, 0, 0, 0, 0])


# --------------------------------------------------------------------------
# Kernel body
# --------------------------------------------------------------------------
def _kernel(x_ref, pwc_ref, bc_ref, w1_ref, b1_ref,
            w2a_ref, w2b_ref, b2_ref, o_ref):
    x = x_ref[...]                                                    # (TB, 48)
    # Fused gather + mask + Conv2d(1,8,3,stride=2) + row-sum: one (48,73)
    # matmul with f32 accumulation.  Column 72 of PWc is all ones and its bias
    # is 0, so pre[:, 72] == sum(x[:, 0:48]).
    pre = jnp.dot(x, pwc_ref[...],
                  preferred_element_type=jnp.float32) + bc_ref[...]   # (TB, 73)
    c = pre[:, CONV_OUT:CONV_OUT + 1]                                 # (TB, 1)
    h0 = jnp.maximum(pre, 0.0)                                        # (TB, 73)
    # encoders: Linear(72,16) + ReLU.  W1 has a zero row 72, so the (unused)
    # relu(c) column contributes nothing.
    h1 = jnp.maximum(
        jnp.dot(h0.astype(w1_ref.dtype), w1_ref[...],
                preferred_element_type=jnp.float32) + b1_ref[...], 0.0)  # (TB, 16)
    # hstack((h1, c)) @ W_enc.T == h1 @ W2a + c * W2b   (Linear(17,16) + ReLU)
    h2 = jnp.maximum(
        jnp.dot(h1.astype(w2a_ref.dtype), w2a_ref[...],
                preferred_element_type=jnp.float32)
        + c * w2b_ref[...] + b2_ref[...], 0.0)                        # (TB, 16)
    # output = hstack((h2, c)) — single lane-concat + single store.
    o_ref[...] = jnp.concatenate([h2, c], axis=1).astype(o_ref.dtype)


# --------------------------------------------------------------------------
# Parameters & host-side folding
# --------------------------------------------------------------------------
def make_params(key):
    """Deterministic parameter init (shapes match the PyTorch module)."""
    k = jax.random.split(key, 6)
    conv_w = jax.random.normal(k[0], (8, 1, 3, 3), jnp.float32) * 0.1   # Conv2d(1,8,3)
    conv_b = jax.random.normal(k[1], (8,), jnp.float32) * 0.1
    w_enc0 = jax.random.normal(k[2], (16, 72), jnp.float32) * 0.1       # Linear(72,16)
    b_enc0 = jax.random.normal(k[3], (16,), jnp.float32) * 0.1
    w_lenc = jax.random.normal(k[4], (16, 17), jnp.float32) * 0.1       # Linear(17,16)
    b_lenc = jax.random.normal(k[5], (16,), jnp.float32) * 0.1
    return conv_w, conv_b, w_enc0, b_enc0, w_lenc, b_lenc


def build_kernel_operands(params, dtype=jnp.float32):
    """Fold gather/mask + strided conv (+ ones column for c) into one dense
    matrix; transpose the Linear weights.

    `dtype` applies to the matmul weights and the streamed input only; biases
    and all accumulation stay f32.  bf16 is worth enabling on every TPU
    generation (v5e included) since the kernel is HBM-traffic bound.
    """
    conv_w, conv_b, w_enc0, b_enc0, w_lenc, b_lenc = params

    # (48, 64) selection matrix: column j pulls x[:, ARRANGE[j]] * ARRMASK[j]
    P = np.zeros((IN_FEATURES, 64), np.float32)
    for j in range(64):
        if ARRMASK[j]:
            P[ARRANGE[j], j] = 1.0

    # Fold the strided conv into a (64, 72) matrix + (72,) bias.
    # flatten order of conv output (B,8,3,3) is out_idx = c*9 + oh*3 + ow.
    cw = np.asarray(conv_w)
    cb = np.asarray(conv_b)
    Wc = np.zeros((64, CONV_OUT), np.float32)
    bc = np.zeros((CONV_COLS,), np.float32)          # last entry stays 0 (c column)
    for co in range(8):
        for oh in range(3):
            for ow in range(3):
                out_idx = co * 9 + oh * 3 + ow
                bc[out_idx] = cb[co]
                for kh in range(3):
                    for kw in range(3):
                        pix = (2 * oh + kh) * 8 + (2 * ow + kw)
                        Wc[pix, out_idx] += cw[co, 0, kh, kw]

    # Fuse gather/mask with the conv (exact: P is 0/1 selection) and append
    # the ones column that computes c on the MXU.  (48, 73)
    PWc = np.concatenate([P @ Wc, np.ones((IN_FEATURES, 1), np.float32)], axis=1)

    # Linear(72,16): pad with a zero row so the relu(c) column is inert. (73, 16)
    W1 = np.concatenate([np.asarray(w_enc0).T, np.zeros((1, HID), np.float32)], axis=0)
    b1 = np.asarray(b_enc0).reshape(1, HID)

    # Linear(17,16): split into the part acting on h1 and the part acting on c.
    W2 = np.asarray(w_lenc).T                        # (17, 16)
    W2a = W2[:16, :]                                 # (16, 16)
    W2b = W2[16:17, :]                               # (1, 16)
    b2 = np.asarray(b_lenc).reshape(1, HID)

    return (jnp.asarray(PWc, dtype),
            jnp.asarray(bc.reshape(1, CONV_COLS), jnp.float32),
            jnp.asarray(W1, dtype),
            jnp.asarray(b1, jnp.float32),
            jnp.asarray(W2a, dtype),
            jnp.asarray(W2b, jnp.float32),
            jnp.asarray(b2, jnp.float32))


# --------------------------------------------------------------------------
# Tiling / pallas_call wrapper
# --------------------------------------------------------------------------
_SPLIT_THRESHOLD = 2048   # below this, a single grid step is fine (overhead-bound)


def _pick_tb(batch, max_tile):
    """Pick the batch tile.

    Prefers (a) one whole-batch tile for small B (block == full array dims, so
    no alignment or padding is needed), (b) a multiple-of-8 tile that divides B
    exactly (no ragged tail / no output concat), and (c) >= 2 grid steps for
    large B so v7x's two TensorCores both get work.
    """
    cap = max(8, (max_tile // 8) * 8)
    if batch <= cap and batch < _SPLIT_THRESHOLD:
        return batch
    hi = min(cap, max(8, ((batch // 2) // 8) * 8))
    for t in range(hi, max(8, hi // 2) - 1, -8):
        if batch % t == 0:
            return t
    return hi               # no nice divisor: ragged tail handled by a tiny 2nd call


def _encode(x, operands, tb, n_steps, vmem_limit_bytes):
    """One pallas_call processing the first n_steps*tb rows of x (no padding)."""
    rows = tb * n_steps
    in_itemsize = x.dtype.itemsize
    w_bytes = sum(int(np.prod(o.shape)) * o.dtype.itemsize for o in operands)
    cost = pl.CostEstimate(
        flops=2 * rows * (IN_FEATURES * CONV_COLS + CONV_COLS * HID + HID * HID),
        transcendentals=0,
        bytes_accessed=rows * (IN_FEATURES * in_itemsize + OUT_FEATURES * 4) + w_bytes,
    )
    const = lambda i: (0, 0)   # weights/biases: same (VMEM-resident) block every step
    return pl.pallas_call(
        _kernel,
        out_shape=jax.ShapeDtypeStruct((rows, OUT_FEATURES), jnp.float32),
        grid_spec=pltpu.PrefetchScalarGridSpec(
            num_scalar_prefetch=0,
            grid=(n_steps,),
            in_specs=[
                pl.BlockSpec((tb, IN_FEATURES), lambda i: (i, 0)),      # x tile
                pl.BlockSpec((IN_FEATURES, CONV_COLS), const),          # PWc (+ones col)
                pl.BlockSpec((1, CONV_COLS), const),                    # bc
                pl.BlockSpec((CONV_COLS, HID), const),                  # W1 (+zero row)
                pl.BlockSpec((1, HID), const),                          # b1
                pl.BlockSpec((HID, HID), const),                        # W2a
                pl.BlockSpec((1, HID), const),                          # W2b (c column)
                pl.BlockSpec((1, HID), const),                          # b2
            ],
            out_specs=pl.BlockSpec((tb, OUT_FEATURES), lambda i: (i, 0)),
        ),
        compiler_params=pltpu.CompilerParams(
            dimension_semantics=("parallel",),   # shard batch across TCs (v7x)
            vmem_limit_bytes=vmem_limit_bytes,
        ),
        cost_estimate=cost,
    )(x, *operands)


def cae_encoder_forward(x, operands, *, max_tile=4096,
                        vmem_limit_bytes=32 * 1024 * 1024):
    """Run the fused encoder. x: (B, 48) f32 or bf16 -> (B, 17) f32.

    max_tile=4096 keeps the double-buffered, lane-padded tiles + f32
    intermediates well under 32 MiB scoped VMEM (safe on v7x's 64 MiB physical
    VMEM).  If you push max_tile >= 8192 on the 128 MiB-VMEM chips (v5e/v6e),
    also raise vmem_limit_bytes to ~64 MiB.
    """
    batch = x.shape[0]
    if batch == 0:
        return jnp.zeros((0, OUT_FEATURES), jnp.float32)
    tb = _pick_tb(batch, max_tile)
    n_full = batch // tb
    # Main call streams full-size tiles directly out of the original HBM array
    # (no jnp.pad copy); blocks only touch the first n_full*tb rows.
    main = _encode(x, operands, tb, n_full, vmem_limit_bytes)
    rem = batch - n_full * tb
    if rem == 0:
        return main
    # Tiny ragged tail: second pallas_call whose block equals its full array
    # dims (no alignment/padding needed, < tb rows copied).
    tail = _encode(x[n_full * tb:], operands, rem, 1, vmem_limit_bytes)
    return jnp.concatenate([main, tail], axis=0)


# --------------------------------------------------------------------------
# Reference (mirrors the PyTorch forward exactly)
# --------------------------------------------------------------------------
def reference_forward(x, params):
    conv_w, conv_b, w_enc0, b_enc0, w_lenc, b_lenc = params
    x = np.asarray(x, np.float32)
    c = x[:, 0:48].sum(axis=1, keepdims=True)
    inp = x[:, ARRANGE].copy()
    inp[:, ARRMASK == 0] = 0.0
    img = inp.reshape(x.shape[0], 1, 8, 8)
    cw = np.asarray(conv_w)
    cb = np.asarray(conv_b)
    out = np.zeros((x.shape[0], 8, 3, 3), np.float32)
    for co in range(8):
        for oh in range(3):
            for ow in range(3):
                patch = img[:, 0, 2 * oh:2 * oh + 3, 2 * ow:2 * ow + 3]
                out[:, co, oh, ow] = (patch * cw[co, 0]).sum(axis=(1, 2)) + cb[co]
    h = np.maximum(out, 0.0).reshape(x.shape[0], -1)
    h = np.maximum(h @ np.asarray(w_enc0).T + np.asarray(b_enc0), 0.0)
    h = np.hstack([h, c])
    h = np.maximum(h @ np.asarray(w_lenc).T + np.asarray(b_lenc), 0.0)
    return np.hstack([h, c])


if __name__ == "__main__":
    key = jax.random.PRNGKey(0)
    pkey, xkey, xkey2 = jax.random.split(key, 3)
    params = make_params(pkey)

    # Small shape consistent with the module: batch=2, 48 input features.
    B = 2
    x = jax.random.normal(xkey, (B, IN_FEATURES), jnp.float32)
    ref = reference_forward(x, params)

    # f32 path: exact check against the PyTorch-equivalent reference.
    operands_f32 = build_kernel_operands(params, jnp.float32)
    out = jax.block_until_ready(cae_encoder_forward(x, operands_f32))
    np.testing.assert_allclose(np.asarray(out), ref, rtol=1e-4, atol=1e-4)

    # Multi-step grid + ragged-tail path (exercises the tiling code, no pad copy).
    B2 = 300
    x2 = jax.random.normal(xkey2, (B2, IN_FEATURES), jnp.float32)
    ref2 = reference_forward(x2, params)
    out2 = jax.block_until_ready(
        cae_encoder_forward(x2, operands_f32, max_tile=128))
    np.testing.assert_allclose(np.asarray(out2), ref2, rtol=1e-4, atol=1e-4)

    # bf16 streaming path (bf16 weights/input, f32 accumulate & biases) —
    # halves the dominant HBM traffic on all generations; c now gets f32 MXU
    # accumulation via the ones column.  Loose tolerance appropriate for bf16.
    operands_bf16 = build_kernel_operands(params, jnp.bfloat16)
    out_bf16 = jax.block_until_ready(
        cae_encoder_forward(x.astype(jnp.bfloat16), operands_bf16))
    np.testing.assert_allclose(np.asarray(out_bf16), ref, rtol=0.1, atol=0.5)

    print("KERNEL_OK")
</pallas_src>

<mosaic_0001>
module attributes {stable_mosaic.version = 11 : i64} {
  func.func @_kernel(%arg0: i32, %arg1: memref<2x48xf32, #tpu.memory_space<vmem>>, %arg2: memref<48x73xf32, #tpu.memory_space<vmem>>, %arg3: memref<1x73xf32, #tpu.memory_space<vmem>>, %arg4: memref<73x16xf32, #tpu.memory_space<vmem>>, %arg5: memref<1x16xf32, #tpu.memory_space<vmem>>, %arg6: memref<16x16xf32, #tpu.memory_space<vmem>>, %arg7: memref<1x16xf32, #tpu.memory_space<vmem>>, %arg8: memref<1x16xf32, #tpu.memory_space<vmem>>, %arg9: memref<2x17xf32, #tpu.memory_space<vmem>>) attributes {dimension_semantics = [#tpu.dimension_semantics<parallel>], iteration_bounds = array<i64: 1>, scalar_prefetch = 0 : i64, scratch_operands = 0 : i64, tpu.core_type = #tpu.core_type<tc>, window_params = [{transform_indices = @transform_0, window_bounds = array<i64: 2, 48>}, {pipeline_mode = #tpu.pipeline_mode<synchronous>, transform_indices = @transform_1, window_bounds = array<i64: 48, 73>}, {pipeline_mode = #tpu.pipeline_mode<synchronous>, transform_indices = @transform_2, window_bounds = array<i64: 1, 73>}, {pipeline_mode = #tpu.pipeline_mode<synchronous>, transform_indices = @transform_3, window_bounds = array<i64: 73, 16>}, {pipeline_mode = #tpu.pipeline_mode<synchronous>, transform_indices = @transform_4, window_bounds = array<i64: 1, 16>}, {pipeline_mode = #tpu.pipeline_mode<synchronous>, transform_indices = @transform_5, window_bounds = array<i64: 16, 16>}, {pipeline_mode = #tpu.pipeline_mode<synchronous>, transform_indices = @transform_6, window_bounds = array<i64: 1, 16>}, {pipeline_mode = #tpu.pipeline_mode<synchronous>, transform_indices = @transform_7, window_bounds = array<i64: 1, 16>}, {transform_indices = @transform_8, window_bounds = array<i64: 2, 17>}]} {
    %c0 = arith.constant 0 : index
    %c0_0 = arith.constant 0 : index
    %0 = vector.load %arg1[%c0, %c0_0] : memref<2x48xf32, #tpu.memory_space<vmem>>, vector<2x48xf32>
    %c0_1 = arith.constant 0 : index
    %c0_2 = arith.constant 0 : index
    %1 = vector.load %arg2[%c0_1, %c0_2] : memref<48x73xf32, #tpu.memory_space<vmem>>, vector<48x73xf32>
    %cst = arith.constant dense<0.000000e+00> : vector<2x73xf32>
    %2 = tpu.matmul %0, %1, %cst {dimension_numbers = #tpu.dot_dimension_numbers<[1], [0], [0], [1], [0, 0, 1, 1], [], []>} : vector<2x48xf32>, vector<48x73xf32>, vector<2x73xf32> -> vector<2x73xf32>
    %c0_3 = arith.constant 0 : index
    %c0_4 = arith.constant 0 : index
    %3 = vector.load %arg3[%c0_3, %c0_4] : memref<1x73xf32, #tpu.memory_space<vmem>>, vector<1x73xf32>
    %4 = vector.broadcast %3 : vector<1x73xf32> to vector<2x73xf32>
    %5 = arith.addf %2, %4 : vector<2x73xf32>
    %6 = vector.extract_strided_slice %5 {offsets = [0, 72], sizes = [2, 1], strides = [1, 1]} : vector<2x73xf32> to vector<2x1xf32>
    %cst_5 = arith.constant 0.000000e+00 : f32
    %7 = vector.broadcast %cst_5 : f32 to vector<2x73xf32>
    %8 = arith.maximumf %5, %7 : vector<2x73xf32>
    %c0_6 = arith.constant 0 : index
    %c0_7 = arith.constant 0 : index
    %9 = vector.load %arg4[%c0_6, %c0_7] : memref<73x16xf32, #tpu.memory_space<vmem>>, vector<73x16xf32>
    %cst_8 = arith.constant dense<0.000000e+00> : vector<2x16xf32>
    %10 = tpu.matmul %8, %9, %cst_8 {dimension_numbers = #tpu.dot_dimension_numbers<[1], [0], [0], [1], [0, 0, 1, 1], [], []>} : vector<2x73xf32>, vector<73x16xf32>, vector<2x16xf32> -> vector<2x16xf32>
    %c0_9 = arith.constant 0 : index
    %c0_10 = arith.constant 0 : index
    %11 = vector.load %arg5[%c0_9, %c0_10] : memref<1x16xf32, #tpu.memory_space<vmem>>, vector<1x16xf32>
    %12 = vector.broadcast %11 : vector<1x16xf32> to vector<2x16xf32>
    %13 = arith.addf %10, %12 : vector<2x16xf32>
    %cst_11 = arith.constant 0.000000e+00 : f32
    %14 = vector.broadcast %cst_11 : f32 to vector<2x16xf32>
    %15 = arith.maximumf %13, %14 : vector<2x16xf32>
    %c0_12 = arith.constant 0 : index
    %c0_13 = arith.constant 0 : index
    %16 = vector.load %arg6[%c0_12, %c0_13] : memref<16x16xf32, #tpu.memory_space<vmem>>, vector<16x16xf32>
    %cst_14 = arith.constant dense<0.000000e+00> : vector<2x16xf32>
    %17 = tpu.matmul %15, %16, %cst_14 {dimension_numbers = #tpu.dot_dimension_numbers<[1], [0], [0], [1], [0, 0, 1, 1], [], []>} : vector<2x16xf32>, vector<16x16xf32>, vector<2x16xf32> -> vector<2x16xf32>
    %c0_15 = arith.constant 0 : index
    %c0_16 = arith.constant 0 : index
    %18 = vector.load %arg7[%c0_15, %c0_16] : memref<1x16xf32, #tpu.memory_space<vmem>>, vector<1x16xf32>
    %19 = vector.broadcast %6 : vector<2x1xf32> to vector<2x16xf32>
    %20 = vector.broadcast %18 : vector<1x16xf32> to vector<2x16xf32>
    %21 = arith.mulf %19, %20 : vector<2x16xf32>
    %22 = arith.addf %17, %21 : vector<2x16xf32>
    %c0_17 = arith.constant 0 : index
    %c0_18 = arith.constant 0 : index
    %23 = vector.load %arg8[%c0_17, %c0_18] : memref<1x16xf32, #tpu.memory_space<vmem>>, vector<1x16xf32>
    %24 = vector.broadcast %23 : vector<1x16xf32> to vector<2x16xf32>
    %25 = arith.addf %22, %24 : vector<2x16xf32>
    %cst_19 = arith.constant 0.000000e+00 : f32
    %26 = vector.broadcast %cst_19 : f32 to vector<2x16xf32>
    %27 = arith.maximumf %25, %26 : vector<2x16xf32>
    %28 = tpu.concatenate %27, %6 in 1 : vector<2x16xf32>, vector<2x1xf32> -> vector<2x17xf32>
    %c0_20 = arith.constant 0 : index
    %c0_21 = arith.constant 0 : index
    %29 = vector.load %arg9[%c0_20, %c0_21] : memref<2x17xf32, #tpu.memory_space<vmem>>, vector<2x17xf32>
    tpu.vector_store %arg9[%c0_20, %c0_21], %28 {strides = array<i32>} : memref<2x17xf32, #tpu.memory_space<vmem>>, vector<2x17xf32>,
    return
  }
  func.func @transform_0(%arg0: i32) -> (i32, i32) {
    %c0_i32 = arith.constant 0 : i32
    %c0_i32_0 = arith.constant 0 : i32
    return %arg0, %c0_i32 : i32, i32
  }
  func.func @transform_1(%arg0: i32) -> (i32, i32) {
    %c0_i32 = arith.constant 0 : i32
    %c0_i32_0 = arith.constant 0 : i32
    %c0_i32_1 = arith.constant 0 : i32
    return %c0_i32, %c0_i32_0 : i32, i32
  }
  func.func @transform_2(%arg0: i32) -> (i32, i32) {
    %c0_i32 = arith.constant 0 : i32
    %c0_i32_0 = arith.constant 0 : i32
    %c0_i32_1 = arith.constant 0 : i32
    return %c0_i32, %c0_i32_0 : i32, i32
  }
  func.func @transform_3(%arg0: i32) -> (i32, i32) {
    %c0_i32 = arith.constant 0 : i32
    %c0_i32_0 = arith.constant 0 : i32
    %c0_i32_1 = arith.constant 0 : i32
    return %c0_i32, %c0_i32_0 : i32, i32
  }
  func.func @transform_4(%arg0: i32) -> (i32, i32) {
    %c0_i32 = arith.constant 0 : i32
    %c0_i32_0 = arith.constant 0 : i32
    %c0_i32_1 = arith.constant 0 : i32
    return %c0_i32, %c0_i32_0 : i32, i32
  }
  func.func @transform_5(%arg0: i32) -> (i32, i32) {
    %c0_i32 = arith.constant 0 : i32
    %c0_i32_0 = arith.constant 0 : i32
    %c0_i32_1 = arith.constant 0 : i32
    return %c0_i32, %c0_i32_0 : i32, i32
  }
  func.func @transform_6(%arg0: i32) -> (i32, i32) {
    %c0_i32 = arith.constant 0 : i32
    %c0_i32_0 = arith.constant 0 : i32
    %c0_i32_1 = arith.constant 0 : i32
    return %c0_i32, %c0_i32_0 : i32, i32
  }
  func.func @transform_7(%arg0: i32) -> (i32, i32) {
    %c0_i32 = arith.constant 0 : i32
    %c0_i32_0 = arith.constant 0 : i32
    %c0_i32_1 = arith.constant 0 : i32
    return %c0_i32, %c0_i32_0 : i32, i32
  }
  func.func @transform_8(%arg0: i32) -> (i32, i32) {
    %c0_i32 = arith.constant 0 : i32
    %c0_i32_0 = arith.constant 0 : i32
    return %arg0, %c0_i32 : i32, i32
  }
}

</mosaic_0001>

<llo_original>
// kernel: tpu_custom_call.1
$region0: #{tpu_custom_call.1}
  #allocation0 [shape = 'u32[]', space=smem, size = 0x4, offset = 0x4, fixed_abs, tag = 'smem constant byte address 0x4 - core index']
  #allocation1 [shape = 'u32[144,128]{1,0:T(1,128)}', space=vmem, size = 0x12000, scoped, tag = 'internal scratch']
  %s0 = inlined_call_operand.vmem [shape: f32[2,48], index: 0, kind: input, shape index: {}]
  %s1 = inlined_call_operand.vmem [shape: f32[48,73], index: 1, kind: input, shape index: {}]
  %s2 = inlined_call_operand.vmem [shape: f32[1,73], index: 2, kind: input, shape index: {}]
  %s3 = inlined_call_operand.vmem [shape: f32[73,16], index: 3, kind: input, shape index: {}]
  %s4 = inlined_call_operand.vmem [shape: f32[1,16], index: 4, kind: input, shape index: {}]
  %s5 = inlined_call_operand.vmem [shape: f32[16,16], index: 5, kind: input, shape index: {}]
  %s6 = inlined_call_operand.vmem [shape: f32[1,16], index: 6, kind: input, shape index: {}]
  %s7 = inlined_call_operand.vmem [shape: f32[1,16], index: 7, kind: input, shape index: {}]
  %s8 = inlined_call_operand.hbm [shape: f32[2,17], index: 8, kind: output, shape index: {}]
  %s9 = sld [smem:[#allocation0]]
  $region42: #{tpu_custom_call.1} parent=0
    _
  %s11 = ssub.s32 1, %s9
  %s12 = scalar_select 0, %s11, %s9
  $region1: #{tpu_custom_call.1} parent=0
    #allocation2 [shape = 'u8[1024]{0}', space=vmem, size = 0x400, scoped, tag = 'output window, operand 0, single buffered']
    #allocation3 [shape = 's32[1]{0}', space=sflag, size = 0x4, scoped, tag = 'scoped memory for tpu_custom_call.1']
    %13 = vsyncpa [#allocation3], 0
    // Predicated region
    $region2: #{tpu_custom_call.1} parent=1 // pred_check
      _
    $region3: #{tpu_custom_call.1} parent=1 // pred_check_branch
      %15 = sbr.rel (0) target = $region5
    $region4: #{tpu_custom_call.1} parent=1 // pred_region
      _
    $region5: #{tpu_custom_call.1} parent=1 // pred_fallthru
      _
    // Predicated region
    $region6: #{tpu_custom_call.1} parent=1 // pred_check
      _
    $region7: #{tpu_custom_call.1} parent=1 // pred_check_branch
      %17 = sbr.rel (0) target = $region9
    $region8: #{tpu_custom_call.1} parent=1 // pred_region
      _
    $region9: #{tpu_custom_call.1} parent=1 // pred_fallthru
      _
    // Predicated region
    $region10: #{tpu_custom_call.1} parent=1 // pred_check
      _
    $region11: #{tpu_custom_call.1} parent=1 // pred_check_branch
      %19 = sbr.rel (0) target = $region13
    $region12: #{tpu_custom_call.1} parent=1 // pred_region
      _
    $region13: #{tpu_custom_call.1} parent=1 // pred_fallthru
      _
    // Predicated region
    $region14: #{tpu_custom_call.1} parent=1 // pred_check
      _
    $region15: #{tpu_custom_call.1} parent=1 // pred_check_branch
      %21 = sbr.rel (0) target = $region17
    $region16: #{tpu_custom_call.1} parent=1 // pred_region
      _
    $region17: #{tpu_custom_call.1} parent=1 // pred_fallthru
      _
    // Predicated region
    $region18: #{tpu_custom_call.1} parent=1 // pred_check
      _
    $region19: #{tpu_custom_call.1} parent=1 // pred_check_branch
      %23 = sbr.rel (0) target = $region21
    $region20: #{tpu_custom_call.1} parent=1 // pred_region
      _
    $region21: #{tpu_custom_call.1} parent=1 // pred_fallthru
      _
    // Predicated region
    $region22: #{tpu_custom_call.1} parent=1 // pred_check
      _
    $region23: #{tpu_custom_call.1} parent=1 // pred_check_branch
      %25 = sbr.rel (0) target = $region25
    $region24: #{tpu_custom_call.1} parent=1 // pred_region
      _
    $region25: #{tpu_custom_call.1} parent=1 // pred_fallthru
      _
    // Predicated region
    $region26: #{tpu_custom_call.1} parent=1 // pred_check
      _
    $region27: #{tpu_custom_call.1} parent=1 // pred_check_branch
      %27 = sbr.rel (0) target = $region29
    $region28: #{tpu_custom_call.1} parent=1 // pred_region
      _
    $region29: #{tpu_custom_call.1} parent=1 // pred_fallthru
      _
    // Predicated region
    $region30: #{tpu_custom_call.1} parent=1 // pred_check
      _
    $region31: #{tpu_custom_call.1} parent=1 // pred_check_branch
      %29 = sbr.rel (0) target = $region33
    $region32: #{tpu_custom_call.1} parent=1 // pred_region
      _
    $region33: #{tpu_custom_call.1} parent=1 // pred_fallthru
      _
    %v30 = vld [vmem:[%s0] sm:$0x3]
    %v31 = vld [vmem:[%s1] sm:$0xff]
    %v32 = vld [vmem:[%s1 + $0x8] sm:$0xff]
    %v33 = vld [vmem:[%s1 + $0x10] sm:$0xff]
    %v34 = vld [vmem:[%s1 + $0x18] sm:$0xff]
    %v35 = vld [vmem:[%s1 + $0x20] sm:$0xff]
    %v36 = vld [vmem:[%s1 + $0x28] sm:$0xff]
    %v37 = vld [vmem:[%s2] sm:$0x1]
    %v39 = vlaneseq
    %v40 = vshrl.u32 %v39, 7
    %v41 = vsub.s32 0, %v40
    %v42 = vrot.slane %v37, %v41
    %vm44 = vcmask 392192
    %v46 = vsel %vm44, %v30, 0
    %48 = vmatprep.subr.mxu0 0.0
    %49 = vmatpush1.msra.mxu0 %v31
    %50 = vmatprep.subr.mxu0 0.0
    %51 = vmatpush1.msra.mxu0 %v32
    %52 = vmatprep.subr.mxu0 0.0
    %53 = vmatpush1.msra.mxu0 %v33
    %54 = vmatprep.subr.mxu0 0.0
    %55 = vmatpush1.msra.mxu0 %v34
    %56 = vmatprep.subr.mxu0 0.0
    %57 = vmatpush1.msra.mxu0 %v35
    %58 = vmatprep.subr.mxu0 0.0
    %59 = vmatpush1.msra.mxu0 %v36
    %60 = vmatprep.subr.mxu0 0.0
    %61 = vmatpush1.msra.mxu0 0.0
    %62 = vmatprep.subr.mxu0 0.0
    %63 = vmatpush1.msra.mxu0 0.0
    %64 = vmatprep.subr.mxu0 0.0
    %65 = vmatpush1.msra.mxu0 0.0
    %66 = vmatprep.subr.mxu0 0.0
    %67 = vmatpush1.msra.mxu0 0.0
    %68 = vmatprep.subr.mxu0 0.0
    %69 = vmatpush1.msra.mxu0 0.0
    %70 = vmatprep.subr.mxu0 0.0
    %71 = vmatpush1.msra.mxu0 0.0
    %72 = vmatprep.subr.mxu0 0.0
    %73 = vmatpush1.msra.mxu0 0.0
    %74 = vmatprep.subr.mxu0 0.0
    %75 = vmatpush1.msra.mxu0 0.0
    %76 = vmatprep.subr.mxu0 0.0
    %77 = vmatpush1.msra.mxu0 0.0
    %78 = vmatprep.subr.mxu0 0.0
    %79 = vmatpush1.msra.mxu0 0.0
    %80 = vmatprep.subr.mxu0 0.0
    %81 = vmatpush1.msra.mxu0 0.0
    %82 = vmatprep.subr.mxu0 0.0
    %83 = vmatpush1.msra.mxu0 0.0
    %84 = vmatprep.subr.mxu0 0.0
    %85 = vmatpush1.msra.mxu0 0.0
    %86 = vmatprep.subr.mxu0 0.0
    %87 = vmatpush1.msra.mxu0 0.0
    %88 = vmatprep.subr.mxu0 0.0
    %89 = vmatpush1.msra.mxu0 0.0
    %90 = vmatprep.subr.mxu0 0.0
    %91 = vmatpush1.msra.mxu0 0.0
    %92 = vmatprep.subr.mxu0 0.0
    %93 = vmatpush1.msra.mxu0 0.0
    %94 = vmatprep.subr.mxu0 0.0
    %95 = vmatpush1.msra.mxu0 0.0
    %96 = vmatprep.subr.mxu0 0.0
    %97 = vmatpush1.msra.mxu0 0.0
    %98 = vmatprep.subr.mxu0 0.0
    %99 = vmatpush1.msra.mxu0 0.0
    %100 = vmatprep.subr.mxu0 0.0
    %101 = vmatpush1.msra.mxu0 0.0
    %102 = vmatprep.subr.mxu0 0.0
    %103 = vmatpush1.msra.mxu0 0.0
    %104 = vmatprep.subr.mxu0 0.0
    %105 = vmatpush1.msra.mxu0 0.0
    %106 = vmatprep.subr.mxu0 0.0
    %107 = vmatpush1.msra.mxu0 0.0
    %108 = vmatprep.subr.mxu0 0.0
    %109 = vmatpush1.msra.mxu0 0.0
    %110 = vmatprep.subr.mxu0 0.0
    %111 = vmatpush1.msra.mxu0 0.0
    %112 = vmatprep.mubr.f32.mxu0 0.0
    %113 = vmatmul.mubr.f32.gmra.mrb[0].mxu0 %v46
    %v114 = vpop.f32.mrb[0].mxu0
    %v115 = vadd.f32 %v42, %v114
    %v116 = vpop.f32.mrb[0].mxu0
    %117 = vdwg.mxu0
    %v118 = vmax.f32 %v115, 0.0
    %v119 = vld [vmem:[%s3] sm:$0xff]
    %v120 = vld [vmem:[%s3 + $0x8] sm:$0xff]
    %v121 = vld [vmem:[%s3 + $0x10] sm:$0xff]
    %v122 = vld [vmem:[%s3 + $0x18] sm:$0xff]
    %v123 = vld [vmem:[%s3 + $0x20] sm:$0xff]
    %v124 = vld [vmem:[%s3 + $0x28] sm:$0xff]
    %v125 = vld [vmem:[%s3 + $0x30] sm:$0xff]
    %v126 = vld [vmem:[%s3 + $0x38] sm:$0xff]
    %v127 = vld [vmem:[%s3 + $0x40] sm:$0xff]
    %v128 = vld [vmem:[%s3 + $0x48] sm:$0x1]
    %v129 = vld [vmem:[%s4] sm:$0x1]
    %v131 = vlaneseq
    %v132 = vshrl.u32 %v131, 7
    %v133 = vsub.s32 0, %v132
    %v134 = vrot.slane %v129, %v133
    %vm136 = vcmask 596992
    %v138 = vsel %vm136, %v118, 0
    %vm140 = vcmask 1040384
    %v142 = vsel %vm140, %v128, 0
    %144 = vmatprep.subr.mxu0 0.0
    %145 = vmatpush1.msra.mxu0 %v119
    %146 = vmatprep.subr.mxu0 0.0
    %147 = vmatpush1.msra.mxu0 %v120
    %148 = vmatprep.subr.mxu0 0.0
    %149 = vmatpush1.msra.mxu0 %v121
    %150 = vmatprep.subr.mxu0 0.0
    %151 = vmatpush1.msra.mxu0 %v122
    %152 = vmatprep.subr.mxu0 0.0
    %153 = vmatpush1.msra.mxu0 %v123
    %154 = vmatprep.subr.mxu0 0.0
    %155 = vmatpush1.msra.mxu0 %v124
    %156 = vmatprep.subr.mxu0 0.0
    %157 = vmatpush1.msra.mxu0 %v125
    %158 = vmatprep.subr.mxu0 0.0
    %159 = vmatpush1.msra.mxu0 %v126
    %160 = vmatprep.subr.mxu0 0.0
    %161 = vmatpush1.msra.mxu0 %v127
    %162 = vmatprep.subr.mxu0 0.0
    %163 = vmatpush1.msra.mxu0 %v142
    %164 = vmatprep.subr.mxu0 0.0
    %165 = vmatpush1.msra.mxu0 0.0
    %166 = vmatprep.subr.mxu0 0.0
    %167 = vmatpush1.msra.mxu0 0.0
    %168 = vmatprep.subr.mxu0 0.0
    %169 = vmatpush1.msra.mxu0 0.0
    %170 = vmatprep.subr.mxu0 0.0
    %171 = vmatpush1.msra.mxu0 0.0
    %172 = vmatprep.subr.mxu0 0.0
    %173 = vmatpush1.msra.mxu0 0.0
    %174 = vmatprep.subr.mxu0 0.0
    %175 = vmatpush1.msra.mxu0 0.0
    %176 = vmatprep.subr.mxu0 0.0
    %177 = vmatpush1.msra.mxu0 0.0
    %178 = vmatprep.subr.mxu0 0.0
    %179 = vmatpush1.msra.mxu0 0.0
    %180 = vmatprep.subr.mxu0 0.0
    %181 = vmatpush1.msra.mxu0 0.0
    %182 = vmatprep.subr.mxu0 0.0
    %183 = vmatpush1.msra.mxu0 0.0
    %184 = vmatprep.subr.mxu0 0.0
    %185 = vmatpush1.msra.mxu0 0.0
    %186 = vmatprep.subr.mxu0 0.0
    %187 = vmatpush1.msra.mxu0 0.0
    %188 = vmatprep.subr.mxu0 0.0
    %189 = vmatpush1.msra.mxu0 0.0
    %190 = vmatprep.subr.mxu0 0.0
    %191 = vmatpush1.msra.mxu0 0.0
    %192 = vmatprep.subr.mxu0 0.0
    %193 = vmatpush1.msra.mxu0 0.0
    %194 = vmatprep.subr.mxu0 0.0
    %195 = vmatpush1.msra.mxu0 0.0
    %196 = vmatprep.subr.mxu0 0.0
    %197 = vmatpush1.msra.mxu0 0.0
    %198 = vmatprep.subr.mxu0 0.0
    %199 = vmatpush1.msra.mxu0 0.0
    %200 = vmatprep.subr.mxu0 0.0
    %201 = vmatpush1.msra.mxu0 0.0
    %202 = vmatprep.subr.mxu0 0.0
    %203 = vmatpush1.msra.mxu0 0.0
    %204 = vmatprep.subr.mxu0 0.0
    %205 = vmatpush1.msra.mxu0 0.0
    %206 = vmatprep.subr.mxu0 0.0
    %207 = vmatpush1.msra.mxu0 0.0
    %208 = vmatprep.mubr.f32.mxu0 0.0
    %209 = vmatmul.mubr.f32.gmra.mrb[0].mxu0 %v138
    %v210 = vpop.f32.mrb[0].mxu0
    %v211 = vadd.f32 %v134, %v210
    %v212 = vpop.f32.mrb[0].mxu0
    %213 = vdwg.mxu0
    %v214 = vmax.f32 %v211, 0.0
    %v215 = vld [vmem:[%s5] sm:$0xff]
    %v216 = vld [vmem:[%s5 + $0x8] sm:$0xff]
    %v217 = vld [vmem:[%s6] sm:$0x1]
    %219 = vset.pattern.permute.xlu0 72
    %220 = vperm.xlu0 %219, %v115
    %v221 = vpop.permute.xlu0 %220
    %v224 = vlaneseq
    %v225 = vshrl.u32 %v224, 7
    %v226 = vsub.s32 0, %v225
    %v227 = vrot.slane %v217, %v226
    %v229 = vmul.f32 %v221, %v227
    %vm230 = vcmask 130048
    %v232 = vsel %vm230, %v214, 0
    %234 = vmatprep.subr.mxu0 0.0
    %235 = vmatpush1.msra.mxu0 %v215
    %236 = vmatprep.subr.mxu0 0.0
    %237 = vmatpush1.msra.mxu0 %v216
    %238 = vmatprep.subr.mxu0 0.0
    %239 = vmatpush1.msra.mxu0 0.0
    %240 = vmatprep.subr.mxu0 0.0
    %241 = vmatpush1.msra.mxu0 0.0
    %242 = vmatprep.subr.mxu0 0.0
    %243 = vmatpush1.msra.mxu0 0.0
    %244 = vmatprep.subr.mxu0 0.0
    %245 = vmatpush1.msra.mxu0 0.0
    %246 = vmatprep.subr.mxu0 0.0
    %247 = vmatpush1.msra.mxu0 0.0
    %248 = vmatprep.subr.mxu0 0.0
    %249 = vmatpush1.msra.mxu0 0.0
    %250 = vmatprep.subr.mxu0 0.0
    %251 = vmatpush1.msra.mxu0 0.0
    %252 = vmatprep.subr.mxu0 0.0
    %253 = vmatpush1.msra.mxu0 0.0
    %254 = vmatprep.subr.mxu0 0.0
    %255 = vmatpush1.msra.mxu0 0.0
    %256 = vmatprep.subr.mxu0 0.0
    %257 = vmatpush1.msra.mxu0 0.0
    %258 = vmatprep.subr.mxu0 0.0
    %259 = vmatpush1.msra.mxu0 0.0
    %260 = vmatprep.subr.mxu0 0.0
    %261 = vmatpush1.msra.mxu0 0.0
    %262 = vmatprep.subr.mxu0 0.0
    %263 = vmatpush1.msra.mxu0 0.0
    %264 = vmatprep.subr.mxu0 0.0
    %265 = vmatpush1.msra.mxu0 0.0
    %266 = vmatprep.subr.mxu0 0.0
    %267 = vmatpush1.msra.mxu0 0.0
    %268 = vmatprep.subr.mxu0 0.0
    %269 = vmatpush1.msra.mxu0 0.0
    %270 = vmatprep.subr.mxu0 0.0
    %271 = vmatpush1.msra.mxu0 0.0
    %272 = vmatprep.subr.mxu0 0.0
    %273 = vmatpush1.msra.mxu0 0.0
    %274 = vmatprep.subr.mxu0 0.0
    %275 = vmatpush1.msra.mxu0 0.0
    %276 = vmatprep.subr.mxu0 0.0
    %277 = vmatpush1.msra.mxu0 0.0
    %278 = vmatprep.subr.mxu0 0.0
    %279 = vmatpush1.msra.mxu0 0.0
    %280 = vmatprep.subr.mxu0 0.0
    %281 = vmatpush1.msra.mxu0 0.0
    %282 = vmatprep.subr.mxu0 0.0
    %283 = vmatpush1.msra.mxu0 0.0
    %284 = vmatprep.subr.mxu0 0.0
    %285 = vmatpush1.msra.mxu0 0.0
    %286 = vmatprep.subr.mxu0 0.0
    %287 = vmatpush1.msra.mxu0 0.0
    %288 = vmatprep.subr.mxu0 0.0
    %289 = vmatpush1.msra.mxu0 0.0
    %290 = vmatprep.subr.mxu0 0.0
    %291 = vmatpush1.msra.mxu0 0.0
    %292 = vmatprep.subr.mxu0 0.0
    %293 = vmatpush1.msra.mxu0 0.0
    %294 = vmatprep.subr.mxu0 0.0
    %295 = vmatpush1.msra.mxu0 0.0
    %296 = vmatprep.subr.mxu0 0.0
    %297 = vmatpush1.msra.mxu0 0.0
    %298 = vmatprep.mubr.f32.mxu0 0.0
    %299 = vmatmul.mubr.f32.gmra.mrb[0].mxu0 %v232
    %v300 = vpop.f32.mrb[0].mxu0
    %v301 = vadd.f32 %v229, %v300
    %v302 = vpop.f32.mrb[0].mxu0
    %303 = vdwg.mxu0
    %v304 = vld [vmem:[%s7] sm:$0x1]
    %v306 = vlaneseq
    %v307 = vshrl.u32 %v306, 7
    %v308 = vsub.s32 0, %v307
    %v309 = vrot.slane %v304, %v308
    %v311 = vadd.f32 %v301, %v309
    %v312 = vmax.f32 %v311, 0.0
    %313 = vrot.lane.b32.xlu0 %v115, 72
    %v314 = vpop.permute.xlu0 %313
    %v316 = vsel %vm230, %v312, %v314
    %vm317 = vcmask 132096
    %318 = vst.msk [vmem:[#allocation2] sm:$0x3] %vm317, %v316
    // Predicated region
    $region34: #{tpu_custom_call.1} parent=1 // pred_check
      _
    $region35: #{tpu_custom_call.1} parent=1 // pred_check_branch
      %320 = sbr.rel (0) target = $region37
    $region36: #{tpu_custom_call.1} parent=1 // pred_region
      %s322 = ssub.s32 32, 32
      %323 = vsyncadd [#allocation3], %s322
      %s325 = sshll.u32 [#allocation2], 4
      %s326 = int_to_ptr.vmem [resolvable:$true] %s325
      %328 = dma.vmem_to_hbm [thread:$0]  %s326, 32, %s8, [#allocation3]
    $region37: #{tpu_custom_call.1} parent=1 // pred_fallthru
      _
    // Predicated region
    $region38: #{tpu_custom_call.1} parent=1 // pred_check
      _
    $region39: #{tpu_custom_call.1} parent=1 // pred_check_branch
      %330 = sbr.rel (0) target = $region41
    $region40: #{tpu_custom_call.1} parent=1 // pred_region
      %331 = dma.done [#allocation3], 32
    $region41: #{tpu_custom_call.1} parent=1 // pred_fallthru
      _
    %332 = vsyncpa [#allocation3], 1

</llo_original>
